<compile_context>
chip_gen: v6e
topology: v6e:2x2x1
jax: 0.10.0
libtpu: 0.0.40
codegen_flags: <defaults>
</compile_context>

<pallas_src>
import jax
import jax.numpy as jnp
from jax.experimental import pallas as pl
from jax.experimental.pallas import tpu as pltpu


# ----------------------------------------------------------------------------
# Kernels.  All operands are laid out so the batch axis is on lanes:
#   xt_ref : (C, TB)   input tile, batch on lanes
#   wt_ref : (P, C)    stacked head weights (transposed)
#   bt_ref : (P, 1)    head biases
#   a_ref  : (1, TB)   per-row head index (select path only)
#   out_ref: (1, TB)   lane-dense result
# ----------------------------------------------------------------------------
def _ranker_global_kernel(xt_ref, wt_ref, bt_ref, out_ref):
    # scores: (P, TB) on the MXU, f32 accumulation
    scores = jnp.dot(wt_ref[...], xt_ref[...], preferred_element_type=jnp.float32)
    scores = scores + bt_ref[...]
    # torch.max(res, ...) chain over heads == max along the head (sublane) axis.
    out_ref[...] = jnp.max(scores, axis=0, keepdims=True)


def _ranker_select_kernel(xt_ref, wt_ref, bt_ref, a_ref, out_ref):
    scores = jnp.dot(wt_ref[...], xt_ref[...], preferred_element_type=jnp.float32)
    scores = scores + bt_ref[...]
    # per-row head selection kept as VPU-only iota/compare/where/sum (no gather).
    head_ids = jax.lax.broadcasted_iota(jnp.int32, scores.shape, 0)   # (P, TB)
    mask = head_ids == a_ref[...]                                     # broadcast (1, TB)
    out_ref[...] = jnp.sum(jnp.where(mask, scores, 0.0), axis=0, keepdims=True)


# ----------------------------------------------------------------------------
# Wrapper
# ----------------------------------------------------------------------------
def _pad_to(n, m):
    return ((n + m - 1) // m) * m


def ranker_forward(x, w, b, is_global, actions=None, *, compute_dtype=None):
    """x: (B, C) float32 (NCHW (B,C,1,1) squeezed), w: (C, P), b: (1, P).

    compute_dtype: optionally jnp.bfloat16 to halve x/w HBM bytes on v6e/v7x
    (accumulation and bias-add/max/select stay in float32).
    """
    B, C = x.shape
    P = w.shape[1]

    cdt = jnp.dtype(compute_dtype) if compute_dtype is not None else jnp.dtype(x.dtype)
    elem_bytes = cdt.itemsize

    # Batch tile: multiple of 128 lanes; keep each (C, TB) x buffer under ~4 MiB
    # so 2x double-buffering stays well inside v5e's 16 MiB scoped default and
    # leaves ample headroom on v7x's 64 MiB VMEM.
    budget_bytes = 4 << 20
    tb_cap = max(128, min(2048, (budget_bytes // (C * elem_bytes)) // 128 * 128))
    tb = min(tb_cap, _pad_to(B, 128))
    b_pad = _pad_to(B, tb)
    n_tiles = b_pad // tb

    # Layout plumbing (wrapper-side): batch on lanes, heads on sublanes.
    xd = x.astype(cdt)
    wd = w.astype(cdt)
    xt = jnp.pad(xd.T, ((0, 0), (0, b_pad - B)))          # (C, B_pad)
    wt = wd.T                                             # (P, C)
    bt = b.reshape(P, 1).astype(jnp.float32)              # (P, 1)

    x_spec = pl.BlockSpec((C, tb), lambda i: (0, i))
    w_spec = pl.BlockSpec((P, C), lambda i: (0, 0))       # tiny, resident every step
    b_spec = pl.BlockSpec((P, 1), lambda i: (0, 0))
    out_spec = pl.BlockSpec((1, tb), lambda i: (0, i))    # lane-dense output

    cparams = pltpu.CompilerParams(dimension_semantics=("parallel",))
    cost = pl.CostEstimate(
        flops=2 * b_pad * C * P,
        transcendentals=0,
        bytes_accessed=(xt.size * xt.dtype.itemsize
                        + wt.size * wt.dtype.itemsize
                        + bt.size * 4
                        + b_pad * 4),
    )

    if is_global:
        out = pl.pallas_call(
            _ranker_global_kernel,
            out_shape=jax.ShapeDtypeStruct((1, b_pad), jnp.float32),
            grid=(n_tiles,),
            in_specs=[x_spec, w_spec, b_spec],
            out_specs=out_spec,
            compiler_params=cparams,
            cost_estimate=cost,
        )(xt, wt, bt)
        return out[0, :B]                                  # matches .view([-1]) -> (B,)
    else:
        assert actions is not None
        a = jnp.pad(actions.astype(jnp.int32).reshape(1, B), ((0, 0), (0, b_pad - B)))
        a_spec = pl.BlockSpec((1, tb), lambda i: (0, i))
        out = pl.pallas_call(
            _ranker_select_kernel,
            out_shape=jax.ShapeDtypeStruct((1, b_pad), jnp.float32),
            grid=(n_tiles,),
            in_specs=[x_spec, w_spec, b_spec, a_spec],
            out_specs=out_spec,
            compiler_params=cparams,
            cost_estimate=cost,
        )(xt, wt, bt, a)
        # TODO(synk): torch returns zeros_like(actions) dtype (int if actions is int);
        # scores are returned here as float32, which matches the usual float-actions use.
        return out[0, :B].reshape(actions.shape)


def init_ranker_params(key, input_dim, preference):
    """Deterministic synthetic init of the `preference` Conv2d(input_dim, 1, 1) heads.

    PyTorch weight shape per head is (1, input_dim, 1, 1); we flatten and stack
    all heads into W of shape (input_dim, preference), biases into (1, preference).
    """
    kw, kb = jax.random.split(key)
    w = jax.random.normal(kw, (input_dim, preference), jnp.float32) * 0.02
    b = jax.random.normal(kb, (1, preference), jnp.float32) * 0.01
    return w, b


if __name__ == "__main__":
    # Small shapes consistent with the module: batch=8, input_dim=128, preference=4.
    B, C, P = 8, 128, 4
    key = jax.random.PRNGKey(0)
    kx, kparam, ka = jax.random.split(key, 3)

    x = jax.random.normal(kx, (B, C), jnp.float32)       # NCHW (B, C, 1, 1) squeezed
    w, b = init_ranker_params(kparam, C, P)
    actions = jax.random.randint(ka, (B,), 0, P)

    out_global = ranker_forward(x, w, b, is_global=True)
    out_local = ranker_forward(x, w, b, is_global=False, actions=actions)
    jax.block_until_ready((out_global, out_local))

    # Pure-JAX reference check (f32 path, tight tolerance).
    ref_scores = x @ w + b                                # (B, P)
    ref_global = jnp.max(ref_scores, axis=-1)             # (B,)
    ref_local = ref_scores[jnp.arange(B), actions]        # (B,)
    assert out_global.shape == (B,)
    assert out_local.shape == actions.shape
    assert jnp.allclose(out_global, ref_global, atol=1e-5, rtol=1e-5)
    assert jnp.allclose(out_local, ref_local, atol=1e-5, rtol=1e-5)

    # bf16 fast path (mem-bound roofline on v6e/v7x): loose tolerance check.
    out_global_bf16 = ranker_forward(x, w, b, is_global=True, compute_dtype=jnp.bfloat16)
    out_local_bf16 = ranker_forward(x, w, b, is_global=False, actions=actions,
                                    compute_dtype=jnp.bfloat16)
    jax.block_until_ready((out_global_bf16, out_local_bf16))
    assert jnp.allclose(out_global_bf16, ref_global, atol=5e-2, rtol=5e-2)
    assert jnp.allclose(out_local_bf16, ref_local, atol=5e-2, rtol=5e-2)

    print("KERNEL_OK")
</pallas_src>

<mosaic_0001>
module attributes {stable_mosaic.version = 11 : i64} {
  func.func @_ranker_global_kernel(%arg0: i32, %arg1: memref<128x128xf32, #tpu.memory_space<vmem>>, %arg2: memref<4x128xf32, #tpu.memory_space<vmem>>, %arg3: memref<4x1xf32, #tpu.memory_space<vmem>>, %arg4: memref<1x128xf32, #tpu.memory_space<vmem>>) attributes {dimension_semantics = [#tpu.dimension_semantics<parallel>], iteration_bounds = array<i64: 1>, scalar_prefetch = 0 : i64, scratch_operands = 0 : i64, tpu.core_type = #tpu.core_type<tc>, window_params = [{transform_indices = @transform_0, window_bounds = array<i64: 128, 128>}, {pipeline_mode = #tpu.pipeline_mode<synchronous>, transform_indices = @transform_1, window_bounds = array<i64: 4, 128>}, {pipeline_mode = #tpu.pipeline_mode<synchronous>, transform_indices = @transform_2, window_bounds = array<i64: 4, 1>}, {transform_indices = @transform_3, window_bounds = array<i64: 1, 128>}]} {
    %c0 = arith.constant 0 : index
    %c0_0 = arith.constant 0 : index
    %0 = vector.load %arg2[%c0, %c0_0] : memref<4x128xf32, #tpu.memory_space<vmem>>, vector<4x128xf32>
    %c0_1 = arith.constant 0 : index
    %c0_2 = arith.constant 0 : index
    %1 = vector.load %arg1[%c0_1, %c0_2] : memref<128x128xf32, #tpu.memory_space<vmem>>, vector<128x128xf32>
    %cst = arith.constant dense<0.000000e+00> : vector<4x128xf32>
    %2 = tpu.matmul %0, %1, %cst {dimension_numbers = #tpu.dot_dimension_numbers<[1], [0], [0], [1], [0, 0, 1, 1], [], []>} : vector<4x128xf32>, vector<128x128xf32>, vector<4x128xf32> -> vector<4x128xf32>
    %c0_3 = arith.constant 0 : index
    %c0_4 = arith.constant 0 : index
    %3 = vector.load %arg3[%c0_3, %c0_4] : memref<4x1xf32, #tpu.memory_space<vmem>>, vector<4x1xf32>
    %4 = vector.broadcast %3 : vector<4x1xf32> to vector<4x128xf32>
    %5 = arith.addf %2, %4 : vector<4x128xf32>
    %cst_5 = arith.constant dense<0xFF800000> : vector<128xf32>
    %6 = vector.multi_reduction <maximumf>, %5, %cst_5 [0] : vector<4x128xf32> to vector<128xf32>
    %7 = vector.shape_cast %6 : vector<128xf32> to vector<1x128xf32>
    %c0_6 = arith.constant 0 : index
    %c0_7 = arith.constant 0 : index
    %8 = vector.load %arg4[%c0_6, %c0_7] : memref<1x128xf32, #tpu.memory_space<vmem>>, vector<1x128xf32>
    tpu.vector_store %arg4[%c0_6, %c0_7], %7 {strides = array<i32>} : memref<1x128xf32, #tpu.memory_space<vmem>>, vector<1x128xf32>,
    return
  }
  func.func @transform_0(%arg0: i32) -> (i32, i32) {
    %c0_i32 = arith.constant 0 : i32
    %c0_i32_0 = arith.constant 0 : i32
    return %c0_i32, %arg0 : i32, i32
  }
  func.func @transform_1(%arg0: i32) -> (i32, i32) {
    %c0_i32 = arith.constant 0 : i32
    %c0_i32_0 = arith.constant 0 : i32
    %c0_i32_1 = arith.constant 0 : i32
    return %c0_i32, %c0_i32_0 : i32, i32
  }
  func.func @transform_2(%arg0: i32) -> (i32, i32) {
    %c0_i32 = arith.constant 0 : i32
    %c0_i32_0 = arith.constant 0 : i32
    %c0_i32_1 = arith.constant 0 : i32
    return %c0_i32, %c0_i32_0 : i32, i32
  }
  func.func @transform_3(%arg0: i32) -> (i32, i32) {
    %c0_i32 = arith.constant 0 : i32
    %c0_i32_0 = arith.constant 0 : i32
    return %c0_i32, %arg0 : i32, i32
  }
}

</mosaic_0001>

<llo_original>
// kernel: tpu_custom_call.1
$region0: #{tpu_custom_call.1}
  #allocation0 [shape = 'u32[]', space=smem, size = 0x4, offset = 0x4, fixed_abs, tag = 'smem constant byte address 0x4 - core index']
  #allocation1 [shape = 'u32[144,128]{1,0:T(1,128)}', space=vmem, size = 0x12000, scoped, tag = 'internal scratch']
  %s0 = inlined_call_operand.hbm [shape: f32[128,128], index: 0, kind: input, shape index: {}]
  %s1 = inlined_call_operand.vmem [shape: f32[4,128], index: 1, kind: input, shape index: {}]
  %s2 = inlined_call_operand.vmem [shape: f32[4,1], index: 2, kind: input, shape index: {}]
  %s3 = inlined_call_operand.hbm [shape: f32[1,128], index: 3, kind: output, shape index: {}]
  %s4 = sld [smem:[#allocation0]]
  $region26: #{tpu_custom_call.1} parent=0
    _
  %s6 = ssub.s32 1, %s4
  %s7 = scalar_select 0, %s6, %s4
  $region1: #{tpu_custom_call.1} parent=0
    #allocation2 [shape = 'u8[65536]{0}', space=vmem, size = 0x10000, scoped, tag = 'input window, operand 0, single buffered']
    #allocation3 [shape = 's32[1]{0}', space=sflag, size = 0x4, scoped, tag = 'scoped memory for tpu_custom_call.1']
    #allocation4 [shape = 's32[1]{0}', space=sflag, size = 0x4, scoped, tag = 'scoped memory for tpu_custom_call.1']
    #allocation5 [shape = 'u8[512]{0}', space=vmem, size = 0x400, scoped, tag = 'output window, operand 0, single buffered']
    %8 = vsyncpa [#allocation3], 0
    %9 = vsyncpa [#allocation4], 0
    // Predicated region
    $region2: #{tpu_custom_call.1} parent=1 // pred_check
      _
    $region3: #{tpu_custom_call.1} parent=1 // pred_check_branch
      %11 = sbr.rel (0) target = $region5
    $region4: #{tpu_custom_call.1} parent=1 // pred_region
      %s13 = ssub.s32 2048, 2048
      %14 = vsyncadd [#allocation3], %s13
      %s15 = sshll.u32 [#allocation2], 4
      %s16 = int_to_ptr.vmem [resolvable:$true] %s15
      %21 = dma.hbm_to_vmem [thread:$0]  %s0, 2048, %s16, [#allocation3], 128, 128, 8
    $region5: #{tpu_custom_call.1} parent=1 // pred_fallthru
      _
    // Predicated region
    $region6: #{tpu_custom_call.1} parent=1 // pred_check
      _
    $region7: #{tpu_custom_call.1} parent=1 // pred_check_branch
      %23 = sbr.rel (0) target = $region9
    $region8: #{tpu_custom_call.1} parent=1 // pred_region
      _
    $region9: #{tpu_custom_call.1} parent=1 // pred_fallthru
      _
    // Predicated region
    $region10: #{tpu_custom_call.1} parent=1 // pred_check
      _
    $region11: #{tpu_custom_call.1} parent=1 // pred_check_branch
      %25 = sbr.rel (0) target = $region13
    $region12: #{tpu_custom_call.1} parent=1 // pred_region
      _
    $region13: #{tpu_custom_call.1} parent=1 // pred_fallthru
      _
    // Predicated region
    $region14: #{tpu_custom_call.1} parent=1 // pred_check
      _
    $region15: #{tpu_custom_call.1} parent=1 // pred_check_branch
      %27 = sbr.rel (0) target = $region17
    $region16: #{tpu_custom_call.1} parent=1 // pred_region
      %28 = dma.done [#allocation3], 2048
    $region17: #{tpu_custom_call.1} parent=1 // pred_fallthru
      _
    %v29 = vld [vmem:[%s1] sm:$0xf]
    %v30 = vld [vmem:[#allocation2] sm:$0xff]
    %v31 = vld [vmem:[#allocation2 + $0x8] sm:$0xff]
    %v32 = vld [vmem:[#allocation2 + $0x10] sm:$0xff]
    %v33 = vld [vmem:[#allocation2 + $0x18] sm:$0xff]
    %v34 = vld [vmem:[#allocation2 + $0x20] sm:$0xff]
    %v35 = vld [vmem:[#allocation2 + $0x28] sm:$0xff]
    %v36 = vld [vmem:[#allocation2 + $0x30] sm:$0xff]
    %v37 = vld [vmem:[#allocation2 + $0x38] sm:$0xff]
    %v38 = vld [vmem:[#allocation2 + $0x40] sm:$0xff]
    %v39 = vld [vmem:[#allocation2 + $0x48] sm:$0xff]
    %v40 = vld [vmem:[#allocation2 + $0x50] sm:$0xff]
    %v41 = vld [vmem:[#allocation2 + $0x58] sm:$0xff]
    %v42 = vld [vmem:[#allocation2 + $0x60] sm:$0xff]
    %v43 = vld [vmem:[#allocation2 + $0x68] sm:$0xff]
    %v44 = vld [vmem:[#allocation2 + $0x70] sm:$0xff]
    %v45 = vld [vmem:[#allocation2 + $0x78] sm:$0xff]
    %v46 = vld [vmem:[%s2] sm:$0xf]
    %48 = vset.pattern.permute.xlu0 0
    %49 = vperm.xlu0 %48, %v46
    %v50 = vpop.permute.xlu0 %49
    %52 = vmatprep.subr.mxu0 0.0
    %53 = vmatpush1.msra.mxu0 %v45
    %54 = vmatprep.subr.mxu0 0.0
    %55 = vmatpush1.msra.mxu0 %v44
    %56 = vmatprep.subr.mxu0 0.0
    %57 = vmatpush1.msra.mxu0 %v43
    %58 = vmatprep.subr.mxu0 0.0
    %59 = vmatpush1.msra.mxu0 %v42
    %60 = vmatprep.subr.mxu0 0.0
    %61 = vmatpush1.msra.mxu0 %v41
    %62 = vmatprep.subr.mxu0 0.0
    %63 = vmatpush1.msra.mxu0 %v40
    %64 = vmatprep.subr.mxu0 0.0
    %65 = vmatpush1.msra.mxu0 %v39
    %66 = vmatprep.subr.mxu0 0.0
    %67 = vmatpush1.msra.mxu0 %v38
    %68 = vmatprep.subr.mxu0 0.0
    %69 = vmatpush1.msra.mxu0 %v37
    %70 = vmatprep.subr.mxu0 0.0
    %71 = vmatpush1.msra.mxu0 %v36
    %72 = vmatprep.subr.mxu0 0.0
    %73 = vmatpush1.msra.mxu0 %v35
    %74 = vmatprep.subr.mxu0 0.0
    %75 = vmatpush1.msra.mxu0 %v34
    %76 = vmatprep.subr.mxu0 0.0
    %77 = vmatpush1.msra.mxu0 %v33
    %78 = vmatprep.subr.mxu0 0.0
    %79 = vmatpush1.msra.mxu0 %v32
    %80 = vmatprep.subr.mxu0 0.0
    %81 = vmatpush1.msra.mxu0 %v31
    %82 = vmatprep.subr.mxu0 0.0
    %83 = vmatpush1.msra.mxu0 %v30
    %84 = vmatprep.subr.mxu0 0.0
    %85 = vmatpush2.msra.mxu0 0.0
    %86 = vmatprep.subr.mxu0 0.0
    %87 = vmatpush2.msra.mxu0 0.0
    %88 = vmatprep.subr.mxu0 0.0
    %89 = vmatpush2.msra.mxu0 0.0
    %90 = vmatprep.subr.mxu0 0.0
    %91 = vmatpush2.msra.mxu0 0.0
    %92 = vmatprep.subr.mxu0 0.0
    %93 = vmatpush2.msra.mxu0 0.0
    %94 = vmatprep.subr.mxu0 0.0
    %95 = vmatpush2.msra.mxu0 0.0
    %96 = vmatprep.subr.mxu0 0.0
    %97 = vmatpush2.msra.mxu0 0.0
    %98 = vmatprep.subr.mxu0 0.0
    %99 = vmatpush2.msra.mxu0 0.0
    %100 = vmatprep.subr.mxu0 0.0
    %101 = vmatpush2.msra.mxu0 0.0
    %102 = vmatprep.subr.mxu0 0.0
    %103 = vmatpush2.msra.mxu0 0.0
    %104 = vmatprep.subr.mxu0 0.0
    %105 = vmatpush2.msra.mxu0 0.0
    %106 = vmatprep.subr.mxu0 0.0
    %107 = vmatpush2.msra.mxu0 0.0
    %108 = vmatprep.subr.mxu0 0.0
    %109 = vmatpush2.msra.mxu0 0.0
    %110 = vmatprep.subr.mxu0 0.0
    %111 = vmatpush2.msra.mxu0 0.0
    %112 = vmatprep.subr.mxu0 0.0
    %113 = vmatpush2.msra.mxu0 0.0
    %114 = vmatprep.subr.mxu0 0.0
    %115 = vmatpush2.msra.mxu0 0.0
    %116 = vmatprep.mubr.f32.mxu0 0.0
    %117 = vmatmul.mubr.f32.gmra.mxu0 %v29
    %v118 = vpop.f32.mrf.mxu0
    %v119 = vadd.f32 %v50, %v118
    %v120 = vpop.f32.mrf.mxu0
    %121 = vdwg.mxu0
    %vm122 = vcmask 1043456
    %v123 = vsel %vm122, %v119, -inf
    %v124 = vrot.slane %v123, 4
    %v125 = vmax.f32 %v123, %v124
    %v126 = vrot.slane %v125, 2
    %v127 = vmax.f32 %v125, %v126
    %v128 = vrot.slane %v127, 1
    %v129 = vmax.f32 %v127, %v128
    %130 = vst [vmem:[#allocation5] sm:$0x1] %v129
    // Predicated region
    $region18: #{tpu_custom_call.1} parent=1 // pred_check
      _
    $region19: #{tpu_custom_call.1} parent=1 // pred_check_branch
      %132 = sbr.rel (0) target = $region21
    $region20: #{tpu_custom_call.1} parent=1 // pred_region
      %s134 = ssub.s32 16, 16
      %135 = vsyncadd [#allocation4], %s134
      %s137 = sshll.u32 [#allocation5], 4
      %s138 = int_to_ptr.vmem [resolvable:$true] %s137
      %140 = dma.vmem_to_hbm [thread:$0]  %s138, 16, %s3, [#allocation4]
    $region21: #{tpu_custom_call.1} parent=1 // pred_fallthru
      _
    // Predicated region
    $region22: #{tpu_custom_call.1} parent=1 // pred_check
      _
    $region23: #{tpu_custom_call.1} parent=1 // pred_check_branch
      %142 = sbr.rel (0) target = $region25
    $region24: #{tpu_custom_call.1} parent=1 // pred_region
      %143 = dma.done [#allocation4], 16
    $region25: #{tpu_custom_call.1} parent=1 // pred_fallthru
      _
    %144 = vsyncpa [#allocation3], 1
    %145 = vsyncpa [#allocation4], 1

</llo_original>
